<compile_context>
chip_gen: v6e
topology: v6e:2x2x1
jax: 0.10.0
libtpu: 0.0.40
codegen_flags: <defaults>
</compile_context>

<pallas_src>
import functools
import math

import jax
import jax.numpy as jnp
from jax.experimental import pallas as pl
from jax.experimental.pallas import tpu as pltpu


_SQRT_HALF = math.sqrt(0.5)


# ----------------------------------------------------------------------------- parameter glue
def _weight_norm(v, g):
    """PyTorch nn.utils.weight_norm (dim=0): w = g * v / ||v|| (norm over all non-0 dims)."""
    norm = jnp.sqrt(jnp.sum(v * v, axis=tuple(range(1, v.ndim)), keepdims=True))
    return g * v / norm


def _fc_t(diffusion_step_embed, w, b):
    """nn.Linear(E, C): shared by the Pallas path and the reference (bit-identical bias)."""
    return jnp.einsum("be,ce->bc", diffusion_step_embed, w,
                      precision=jax.lax.Precision.HIGHEST) + b


def _vmem_limit_bytes(default_physical=64 * 1024 * 1024):
    """Generation-aware scoped-VMEM limit (v5e/v6e: 128 MiB phys -> 96 MiB; v7x: 64 -> 48)."""
    try:
        cap = int(pltpu.get_tpu_info().vmem_capacity_bytes)
    except Exception:  # older jax / query unavailable: conservative (v7x-safe) default
        cap = default_physical
    return max(32 * 1024 * 1024, min(cap * 3 // 4, 100 * 1024 * 1024))


def _pick_batch_tile(batch, length, *, target_lanes=256, min_grid_steps=4, max_tile=16):
    """Batch rows per grid step.

    Targets (a) >=256-lane MXU RHS (v6e/v7x MXUs are 2x256^2; v5e only needs 128) and
    (b) >= min(min_grid_steps, batch) grid steps so both v7x TensorCores get work and the
    BlockSpec double-buffering overlaps DMA with compute.
    """
    divisors = [d for d in range(1, min(batch, max_tile) + 1) if batch % d == 0]
    min_steps = min(min_grid_steps, batch)
    for d in divisors:                       # smallest tile that already fills the target lanes
        if d * length >= target_lanes and batch // d >= min_steps:
            return d
    for d in reversed(divisors):             # otherwise: widest tile that keeps enough steps
        if batch // d >= min_steps:
            return d
    return divisors[-1]


# -------------------------------------------------------------------------- fused residual block
def _residual_block_kernel(x_ref, t_ref, wc_ref, bc_ref, wrs_ref, brs_ref,   # inputs
                           y_ref, s_ref,                                     # outputs
                           hpad_ref, rhs_ref, rs_ref,                        # VMEM scratch
                           *, kernel_size, dilation, c_res, mxu_dtype):
    """Fused: h = wn_conv1d(x + part_t); gate = tanh(h[:C])*sigmoid(h[C:]);
    [res; skip] = wn_1x1(gate); y = (x + res)*sqrt(0.5).

    x_ref   : (b_tile, C, L)         f32
    t_ref   : (b_tile, C, 1)         f32   fc_t output (per-batch per-channel bias)
    wc_ref  : (2C, K*C)              bf16  weight-normed conv filters, taps fused on contraction
    bc_ref  : (2C, 1)                f32
    wrs_ref : (C+C_skip, C)          f32   [res_conv ; skip_conv] 1x1 weights fused on rows
    brs_ref : (C+C_skip, 1)          f32
    y_ref   : (b_tile, C, L)         f32
    s_ref   : (b_tile, C_skip, L)    f32
    hpad_ref: (C, L + 2*pad)         f32   zero-padded (x + part_t) row
    rhs_ref : (K*C, b_tile*L)        f32   im2col slab, batch stacked along lanes
    rs_ref  : (C+C_skip, b_tile*L)   f32   fused res/skip result slab
    """
    pad = dilation * (kernel_size - 1) // 2
    b_tile, c_in, L = x_ref.shape
    c_skip = s_ref.shape[1]

    # Zero only the halo columns (the interior is fully overwritten for every batch row).
    if pad > 0:
        hpad_ref[:, pl.ds(0, pad)] = jnp.zeros((c_in, pad), hpad_ref.dtype)
        hpad_ref[:, pl.ds(L + pad, pad)] = jnp.zeros((c_in, pad), hpad_ref.dtype)

    # Build the (K*C, b_tile*L) im2col slab: fused "h_in = x + part_t", in-kernel zero padding,
    # K dilated tap windows read straight off the padded VMEM row with pl.ds offsets.
    for i in range(b_tile):                                   # static unroll over the batch tile
        hpad_ref[:, pl.ds(pad, L)] = x_ref[i] + t_ref[i]
        for k in range(kernel_size):
            rhs_ref[pl.ds(k * c_in, c_in), pl.ds(i * L, L)] = hpad_ref[:, pl.ds(k * dilation, L)]

    # conv_layer: ONE MXU contraction (2C, K*C) x (K*C, b_tile*L), bf16 operands, f32 accumulate.
    h = jnp.dot(wc_ref[...], rhs_ref[...].astype(mxu_dtype),
                preferred_element_type=jnp.float32) + bc_ref[...]

    # TODO(synk): spade_1 / spade_2 are SpadeDecoderLayerBase (S4 + local-attention decoder
    # layers); their definition is not part of this module spec, so they are applied as identity.

    # Gated activation (f32 VPU/EUP) + fused res/skip 1x1 convs in ONE MXU contraction (f32).
    gate = jnp.tanh(h[:c_res, :]) * jax.nn.sigmoid(h[c_res:, :])
    rs_ref[...] = jnp.dot(wrs_ref[...], gate, preferred_element_type=jnp.float32) + brs_ref[...]

    # Epilogue: rows [0,C) of rs are res, rows [C, C+C_skip) are skip.
    for i in range(b_tile):
        res = rs_ref[pl.ds(0, c_res), pl.ds(i * L, L)]
        y_ref[i] = ((x_ref[i] + res) * _SQRT_HALF).astype(y_ref.dtype)
        s_ref[i] = rs_ref[pl.ds(c_res, c_skip), pl.ds(i * L, L)].astype(s_ref.dtype)


def residual_block_forward(params, x, diffusion_step_embed, label_embed=None, *,
                           kernel_size=3, dilation=1, mxu_dtype=jnp.bfloat16, batch_tile=None):
    """Residual_block.forward: returns ((x + res) * sqrt(0.5), skip)."""
    batch, c_res, L = x.shape
    assert kernel_size % 2 == 1, "padding = dilation*(K-1)//2 only keeps L_out == L for odd K"
    pad = dilation * (kernel_size - 1) // 2
    c_skip = params["skip_v"].shape[0]
    assert params["conv_v"].shape[0] == 2 * c_res

    # fc_label is None in this configuration (label_embed_dim=None) -> no label bias branch.
    del label_embed

    # fc_t: per-(batch, channel) diffusion-step bias -- tiny dense layer (parameter glue).
    part_t = _fc_t(diffusion_step_embed, params["fc_t_w"], params["fc_t_b"])       # (B, C)
    part_t = part_t.reshape(batch, c_res, 1).astype(jnp.float32)

    # Parameter glue (tiny): weight-norm reparams, conv tap fusion, res/skip row fusion.
    wc = _weight_norm(params["conv_v"], params["conv_g"])                           # (2C, C, K)
    wc = jnp.transpose(wc, (0, 2, 1)).reshape(2 * c_res, kernel_size * c_res).astype(mxu_dtype)
    bc = params["conv_b"].reshape(2 * c_res, 1).astype(jnp.float32)
    wr = _weight_norm(params["res_v"], params["res_g"])[:, :, 0]                    # (C, C)
    ws = _weight_norm(params["skip_v"], params["skip_g"])[:, :, 0]                  # (C_skip, C)
    wrs = jnp.concatenate([wr, ws], axis=0).astype(jnp.float32)                     # (C+C_skip, C)
    brs = jnp.concatenate([params["res_b"], params["skip_b"]]).reshape(-1, 1).astype(jnp.float32)

    b_tile = _pick_batch_tile(batch, L) if batch_tile is None else batch_tile
    assert batch % b_tile == 0

    vmem_limit = _vmem_limit_bytes()
    # Working-set guard: double-buffered in/out blocks + resident weights + scratch.
    io_bytes = 4 * b_tile * (2 * c_res * L + c_res + c_skip * L)
    w_bytes = 2 * wc.size + 4 * (bc.size + wrs.size + brs.size)
    scr_bytes = 4 * (c_res * (L + 2 * pad)
                     + kernel_size * c_res * b_tile * L
                     + (c_res + c_skip) * b_tile * L)
    assert 2 * (io_bytes + w_bytes) + scr_bytes < vmem_limit * 3 // 4, (
        "per-step working set too large for VMEM; tile the length axis")

    kernel = functools.partial(_residual_block_kernel, kernel_size=kernel_size,
                               dilation=dilation, c_res=c_res, mxu_dtype=mxu_dtype)

    y, skip = pl.pallas_call(
        kernel,
        out_shape=(jax.ShapeDtypeStruct((batch, c_res, L), jnp.float32),
                   jax.ShapeDtypeStruct((batch, c_skip, L), jnp.float32)),
        grid_spec=pltpu.PrefetchScalarGridSpec(
            num_scalar_prefetch=0,
            grid=(batch // b_tile,),
            in_specs=[
                pl.BlockSpec((b_tile, c_res, L), lambda b: (b, 0, 0)),
                pl.BlockSpec((b_tile, c_res, 1), lambda b: (b, 0, 0)),
                pl.BlockSpec((2 * c_res, kernel_size * c_res), lambda b: (0, 0)),
                pl.BlockSpec((2 * c_res, 1), lambda b: (0, 0)),
                pl.BlockSpec((c_res + c_skip, c_res), lambda b: (0, 0)),
                pl.BlockSpec((c_res + c_skip, 1), lambda b: (0, 0)),
            ],
            out_specs=(pl.BlockSpec((b_tile, c_res, L), lambda b: (b, 0, 0)),
                       pl.BlockSpec((b_tile, c_skip, L), lambda b: (b, 0, 0))),
            scratch_shapes=[
                pltpu.VMEM((c_res, L + 2 * pad), jnp.float32),                  # padded row
                pltpu.VMEM((kernel_size * c_res, b_tile * L), jnp.float32),     # im2col slab
                pltpu.VMEM((c_res + c_skip, b_tile * L), jnp.float32),          # res/skip slab
            ],
        ),
        compiler_params=pltpu.CompilerParams(
            dimension_semantics=("parallel",),
            vmem_limit_bytes=vmem_limit,
        ),
    )(x.astype(jnp.float32), part_t, wc, bc, wrs, brs)
    return y, skip


# ----------------------------------------------------------------------------- pure-JAX reference
def _reference_forward(params, x, diffusion_step_embed, *, conv_operand_dtype=jnp.float32):
    batch, c, L = x.shape
    part_t = _fc_t(diffusion_step_embed, params["fc_t_w"], params["fc_t_b"])
    h_in = x + part_t[:, :, None]

    w = _weight_norm(params["conv_v"], params["conv_g"])
    k = w.shape[2]
    pad = (k - 1) // 2
    h = jax.lax.conv_general_dilated(
        h_in.astype(conv_operand_dtype), w.astype(conv_operand_dtype),
        window_strides=(1,), padding=[(pad, pad)], rhs_dilation=(1,),
        dimension_numbers=("NCH", "OIH", "NCH"),
        preferred_element_type=jnp.float32,
        precision=jax.lax.Precision.HIGHEST,
    ) + params["conv_b"][None, :, None]

    # spade_1 / spade_2: identity (see TODO in the kernel)
    gate = jnp.tanh(h[:, :c, :]) * jax.nn.sigmoid(h[:, c:, :])
    wr = _weight_norm(params["res_v"], params["res_g"])[:, :, 0]
    ws = _weight_norm(params["skip_v"], params["skip_g"])[:, :, 0]
    res = jnp.einsum("oc,bcl->bol", wr, gate,
                     precision=jax.lax.Precision.HIGHEST) + params["res_b"][None, :, None]
    skip = jnp.einsum("oc,bcl->bol", ws, gate,
                      precision=jax.lax.Precision.HIGHEST) + params["skip_b"][None, :, None]
    return (x + res) * _SQRT_HALF, skip


# ------------------------------------------------------------------------------------------ main
if __name__ == "__main__":
    # Small shapes consistent with the module:
    # res_channels=8, skip_channels=8, diffusion_step_embed_dim_out=32, batch=2, length=16.
    B, C, C_SKIP, L, E = 2, 8, 8, 16, 32
    K = 3

    key = jax.random.PRNGKey(0)
    ks = jax.random.split(key, 12)

    x = jax.random.normal(ks[0], (B, C, L), dtype=jnp.float32)
    diff_emb = jax.random.normal(ks[1], (B, E), dtype=jnp.float32)

    def kaiming(k, shape):
        fan_in = shape[1] * (shape[2] if len(shape) == 3 else 1)
        return jax.random.normal(k, shape, dtype=jnp.float32) * math.sqrt(2.0 / fan_in)

    def norm0(v):
        return jnp.sqrt(jnp.sum(v * v, axis=tuple(range(1, v.ndim)), keepdims=True))

    def ubound(k, shape, fan_in):
        b = 1.0 / math.sqrt(fan_in)
        return jax.random.uniform(k, shape, minval=-b, maxval=b, dtype=jnp.float32)

    # conv_layer: weight_norm(Conv1d(C, 2C, 3)); g scaled so weight-norm is actually exercised.
    conv_v = kaiming(ks[2], (2 * C, C, K))
    conv_g = norm0(conv_v) * jax.random.uniform(ks[3], (2 * C, 1, 1), minval=0.5, maxval=1.5)
    conv_b = ubound(ks[4], (2 * C,), C * K)
    # res_conv: weight_norm(Conv1d(C, C, 1))
    res_v = kaiming(ks[5], (C, C, 1))
    res_g = norm0(res_v) * jax.random.uniform(ks[6], (C, 1, 1), minval=0.5, maxval=1.5)
    res_b = ubound(ks[7], (C,), C)
    # skip_conv: weight_norm(Conv1d(C, C_skip, 1))
    skip_v = kaiming(ks[8], (C_SKIP, C, 1))
    skip_g = norm0(skip_v) * jax.random.uniform(ks[9], (C_SKIP, 1, 1), minval=0.5, maxval=1.5)
    skip_b = ubound(ks[10], (C_SKIP,), C)
    # fc_t: Linear(E, C)
    fc_t_w = jax.random.normal(ks[11], (C, E), dtype=jnp.float32) / math.sqrt(E)
    fc_t_b = jnp.zeros((C,), jnp.float32)

    params = dict(
        fc_t_w=fc_t_w, fc_t_b=fc_t_b,
        conv_v=conv_v, conv_g=conv_g, conv_b=conv_b,
        res_v=res_v, res_g=res_g, res_b=res_b,
        skip_v=skip_v, skip_g=skip_g, skip_b=skip_b,
    )

    y, skip = jax.jit(residual_block_forward)(params, x, diff_emb)
    y = jax.block_until_ready(y)
    skip = jax.block_until_ready(skip)

    assert y.shape == (B, C, L) and skip.shape == (B, C_SKIP, L)

    # Structural check: reference with matching bf16 conv operands (tight tolerance).
    y_ref, s_ref = _reference_forward(params, x, diff_emb, conv_operand_dtype=jnp.bfloat16)
    assert jnp.allclose(y, y_ref, atol=2e-3, rtol=2e-3), float(jnp.max(jnp.abs(y - y_ref)))
    assert jnp.allclose(skip, s_ref, atol=2e-3, rtol=2e-3), float(jnp.max(jnp.abs(skip - s_ref)))

    # Full-f32 module semantics: difference is bounded by bf16 operand quantization in the conv.
    y32, s32 = _reference_forward(params, x, diff_emb, conv_operand_dtype=jnp.float32)
    assert jnp.allclose(y, y32, atol=5e-2, rtol=5e-2), float(jnp.max(jnp.abs(y - y32)))
    assert jnp.allclose(skip, s32, atol=5e-2, rtol=5e-2), float(jnp.max(jnp.abs(skip - s32)))

    print("KERNEL_OK")
</pallas_src>

<mosaic_0001>
module attributes {stable_mosaic.version = 11 : i64} {
  func.func @_residual_block_kernel(%arg0: i32, %arg1: memref<1x8x16xf32, #tpu.memory_space<vmem>>, %arg2: memref<1x8x1xf32, #tpu.memory_space<vmem>>, %arg3: memref<16x24xbf16, #tpu.memory_space<vmem>>, %arg4: memref<16x1xf32, #tpu.memory_space<vmem>>, %arg5: memref<16x8xf32, #tpu.memory_space<vmem>>, %arg6: memref<16x1xf32, #tpu.memory_space<vmem>>, %arg7: memref<1x8x16xf32, #tpu.memory_space<vmem>>, %arg8: memref<1x8x16xf32, #tpu.memory_space<vmem>>, %arg9: memref<8x18xf32, #tpu.memory_space<vmem>>, %arg10: memref<24x16xf32, #tpu.memory_space<vmem>>, %arg11: memref<16x16xf32, #tpu.memory_space<vmem>>) attributes {dimension_semantics = [#tpu.dimension_semantics<parallel>], iteration_bounds = array<i64: 2>, scalar_prefetch = 0 : i64, scratch_operands = 3 : i64, tpu.core_type = #tpu.core_type<tc>, window_params = [{transform_indices = @transform_0, window_bounds = array<i64: 1, 8, 16>}, {transform_indices = @transform_1, window_bounds = array<i64: 1, 8, 1>}, {pipeline_mode = #tpu.pipeline_mode<synchronous>, transform_indices = @transform_2, window_bounds = array<i64: 16, 24>}, {pipeline_mode = #tpu.pipeline_mode<synchronous>, transform_indices = @transform_3, window_bounds = array<i64: 16, 1>}, {pipeline_mode = #tpu.pipeline_mode<synchronous>, transform_indices = @transform_4, window_bounds = array<i64: 16, 8>}, {pipeline_mode = #tpu.pipeline_mode<synchronous>, transform_indices = @transform_5, window_bounds = array<i64: 16, 1>}, {transform_indices = @transform_6, window_bounds = array<i64: 1, 8, 16>}, {transform_indices = @transform_7, window_bounds = array<i64: 1, 8, 16>}]} {
    %cst = arith.constant 0.000000e+00 : f32
    %0 = vector.broadcast %cst : f32 to vector<8x1xf32>
    %c0 = arith.constant 0 : index
    %c0_0 = arith.constant 0 : index
    %1 = vector.load %arg9[%c0, %c0_0] : memref<8x18xf32, #tpu.memory_space<vmem>>, vector<8x1xf32>
    tpu.vector_store %arg9[%c0, %c0_0], %0 {strides = array<i32>} : memref<8x18xf32, #tpu.memory_space<vmem>>, vector<8x1xf32>,
    %cst_1 = arith.constant 0.000000e+00 : f32
    %2 = vector.broadcast %cst_1 : f32 to vector<8x1xf32>
    %c0_2 = arith.constant 0 : index
    %c17 = arith.constant 17 : index
    %3 = vector.load %arg9[%c0_2, %c17] : memref<8x18xf32, #tpu.memory_space<vmem>>, vector<8x1xf32>
    tpu.vector_store %arg9[%c0_2, %c17], %2 {strides = array<i32>} : memref<8x18xf32, #tpu.memory_space<vmem>>, vector<8x1xf32>,
    %c0_3 = arith.constant 0 : index
    %c0_4 = arith.constant 0 : index
    %c0_5 = arith.constant 0 : index
    %4 = vector.load %arg1[%c0_3, %c0_4, %c0_5] : memref<1x8x16xf32, #tpu.memory_space<vmem>>, vector<1x8x16xf32>
    %5 = vector.shape_cast %4 : vector<1x8x16xf32> to vector<8x16xf32>
    %c0_6 = arith.constant 0 : index
    %c0_7 = arith.constant 0 : index
    %c0_8 = arith.constant 0 : index
    %6 = vector.load %arg2[%c0_6, %c0_7, %c0_8] : memref<1x8x1xf32, #tpu.memory_space<vmem>>, vector<1x8x1xf32>
    %7 = vector.shape_cast %6 : vector<1x8x1xf32> to vector<8x1xf32>
    %8 = vector.broadcast %7 : vector<8x1xf32> to vector<8x16xf32>
    %9 = arith.addf %5, %8 : vector<8x16xf32>
    %c0_9 = arith.constant 0 : index
    %c1 = arith.constant 1 : index
    %10 = vector.load %arg9[%c0_9, %c1] : memref<8x18xf32, #tpu.memory_space<vmem>>, vector<8x16xf32>
    tpu.vector_store %arg9[%c0_9, %c1], %9 {strides = array<i32>} : memref<8x18xf32, #tpu.memory_space<vmem>>, vector<8x16xf32>,
    %c0_10 = arith.constant 0 : index
    %c0_11 = arith.constant 0 : index
    %11 = vector.load %arg9[%c0_10, %c0_11] : memref<8x18xf32, #tpu.memory_space<vmem>>, vector<8x16xf32>
    %c0_12 = arith.constant 0 : index
    %c0_13 = arith.constant 0 : index
    %12 = vector.load %arg10[%c0_12, %c0_13] : memref<24x16xf32, #tpu.memory_space<vmem>>, vector<8x16xf32>
    tpu.vector_store %arg10[%c0_12, %c0_13], %11 {strides = array<i32>} : memref<24x16xf32, #tpu.memory_space<vmem>>, vector<8x16xf32>,
    %c0_14 = arith.constant 0 : index
    %c1_15 = arith.constant 1 : index
    %13 = vector.load %arg9[%c0_14, %c1_15] : memref<8x18xf32, #tpu.memory_space<vmem>>, vector<8x16xf32>
    %c8 = arith.constant 8 : index
    %c0_16 = arith.constant 0 : index
    %14 = vector.load %arg10[%c8, %c0_16] : memref<24x16xf32, #tpu.memory_space<vmem>>, vector<8x16xf32>
    tpu.vector_store %arg10[%c8, %c0_16], %13 {strides = array<i32>} : memref<24x16xf32, #tpu.memory_space<vmem>>, vector<8x16xf32>,
    %c0_17 = arith.constant 0 : index
    %c2 = arith.constant 2 : index
    %15 = vector.load %arg9[%c0_17, %c2] : memref<8x18xf32, #tpu.memory_space<vmem>>, vector<8x16xf32>
    %c16 = arith.constant 16 : index
    %c0_18 = arith.constant 0 : index
    %16 = vector.load %arg10[%c16, %c0_18] : memref<24x16xf32, #tpu.memory_space<vmem>>, vector<8x16xf32>
    tpu.vector_store %arg10[%c16, %c0_18], %15 {strides = array<i32>} : memref<24x16xf32, #tpu.memory_space<vmem>>, vector<8x16xf32>,
    %c0_19 = arith.constant 0 : index
    %c0_20 = arith.constant 0 : index
    %17 = vector.load %arg3[%c0_19, %c0_20] : memref<16x24xbf16, #tpu.memory_space<vmem>>, vector<16x24xbf16>
    %c0_21 = arith.constant 0 : index
    %c0_22 = arith.constant 0 : index
    %18 = vector.load %arg10[%c0_21, %c0_22] : memref<24x16xf32, #tpu.memory_space<vmem>>, vector<24x16xf32>
    %19 = arith.truncf %18 : vector<24x16xf32> to vector<24x16xbf16>
    %cst_23 = arith.constant dense<0.000000e+00> : vector<16x16xf32>
    %20 = tpu.matmul %17, %19, %cst_23 {dimension_numbers = #tpu.dot_dimension_numbers<[1], [0], [0], [1], [0, 0, 1, 1], [], []>} : vector<16x24xbf16>, vector<24x16xbf16>, vector<16x16xf32> -> vector<16x16xf32>
    %c0_24 = arith.constant 0 : index
    %c0_25 = arith.constant 0 : index
    %21 = vector.load %arg4[%c0_24, %c0_25] : memref<16x1xf32, #tpu.memory_space<vmem>>, vector<16x1xf32>
    %22 = vector.broadcast %21 : vector<16x1xf32> to vector<16x16xf32>
    %23 = arith.addf %20, %22 : vector<16x16xf32>
    %24 = vector.extract_strided_slice %23 {offsets = [0, 0], sizes = [8, 16], strides = [1, 1]} : vector<16x16xf32> to vector<8x16xf32>
    %25 = math.tanh %24 : vector<8x16xf32>
    %26 = vector.extract_strided_slice %23 {offsets = [8, 0], sizes = [8, 16], strides = [1, 1]} : vector<16x16xf32> to vector<8x16xf32>
    %27 = arith.negf %26 : vector<8x16xf32>
    %28 = math.exp %27 : vector<8x16xf32>
    %cst_26 = arith.constant 1.000000e+00 : f32
    %29 = vector.broadcast %cst_26 : f32 to vector<8x16xf32>
    %30 = arith.addf %29, %28 : vector<8x16xf32>
    %31 = arith.divf %29, %30 : vector<8x16xf32>
    %32 = arith.mulf %25, %31 : vector<8x16xf32>
    %c0_27 = arith.constant 0 : index
    %c0_28 = arith.constant 0 : index
    %33 = vector.load %arg5[%c0_27, %c0_28] : memref<16x8xf32, #tpu.memory_space<vmem>>, vector<16x8xf32>
    %cst_29 = arith.constant dense<0.000000e+00> : vector<16x16xf32>
    %34 = tpu.matmul %33, %32, %cst_29 {dimension_numbers = #tpu.dot_dimension_numbers<[1], [0], [0], [1], [0, 0, 1, 1], [], []>} : vector<16x8xf32>, vector<8x16xf32>, vector<16x16xf32> -> vector<16x16xf32>
    %c0_30 = arith.constant 0 : index
    %c0_31 = arith.constant 0 : index
    %35 = vector.load %arg6[%c0_30, %c0_31] : memref<16x1xf32, #tpu.memory_space<vmem>>, vector<16x1xf32>
    %36 = vector.broadcast %35 : vector<16x1xf32> to vector<16x16xf32>
    %37 = arith.addf %34, %36 : vector<16x16xf32>
    %c0_32 = arith.constant 0 : index
    %c0_33 = arith.constant 0 : index
    %38 = vector.load %arg11[%c0_32, %c0_33] : memref<16x16xf32, #tpu.memory_space<vmem>>, vector<16x16xf32>
    tpu.vector_store %arg11[%c0_32, %c0_33], %37 {strides = array<i32>} : memref<16x16xf32, #tpu.memory_space<vmem>>, vector<16x16xf32>,
    %c0_34 = arith.constant 0 : index
    %c0_35 = arith.constant 0 : index
    %39 = vector.load %arg11[%c0_34, %c0_35] : memref<16x16xf32, #tpu.memory_space<vmem>>, vector<8x16xf32>
    %c0_36 = arith.constant 0 : index
    %c0_37 = arith.constant 0 : index
    %c0_38 = arith.constant 0 : index
    %40 = vector.load %arg1[%c0_36, %c0_37, %c0_38] : memref<1x8x16xf32, #tpu.memory_space<vmem>>, vector<1x8x16xf32>
    %41 = vector.shape_cast %40 : vector<1x8x16xf32> to vector<8x16xf32>
    %42 = arith.addf %41, %39 : vector<8x16xf32>
    %cst_39 = arith.constant 0.707106769 : f32
    %43 = vector.broadcast %cst_39 : f32 to vector<8x16xf32>
    %44 = arith.mulf %42, %43 : vector<8x16xf32>
    %c0_40 = arith.constant 0 : index
    %c0_41 = arith.constant 0 : index
    %c0_42 = arith.constant 0 : index
    %45 = vector.load %arg7[%c0_40, %c0_41, %c0_42] : memref<1x8x16xf32, #tpu.memory_space<vmem>>, vector<1x8x16xf32>
    %46 = vector.shape_cast %45 : vector<1x8x16xf32> to vector<8x16xf32>
    %47 = vector.shape_cast %44 : vector<8x16xf32> to vector<1x8x16xf32>
    tpu.vector_store %arg7[%c0_40, %c0_41, %c0_42], %47 {strides = array<i32>} : memref<1x8x16xf32, #tpu.memory_space<vmem>>, vector<1x8x16xf32>,
    %c8_43 = arith.constant 8 : index
    %c0_44 = arith.constant 0 : index
    %48 = vector.load %arg11[%c8_43, %c0_44] : memref<16x16xf32, #tpu.memory_space<vmem>>, vector<8x16xf32>
    %c0_45 = arith.constant 0 : index
    %c0_46 = arith.constant 0 : index
    %c0_47 = arith.constant 0 : index
    %49 = vector.load %arg8[%c0_45, %c0_46, %c0_47] : memref<1x8x16xf32, #tpu.memory_space<vmem>>, vector<1x8x16xf32>
    %50 = vector.shape_cast %49 : vector<1x8x16xf32> to vector<8x16xf32>
    %51 = vector.shape_cast %48 : vector<8x16xf32> to vector<1x8x16xf32>
    tpu.vector_store %arg8[%c0_45, %c0_46, %c0_47], %51 {strides = array<i32>} : memref<1x8x16xf32, #tpu.memory_space<vmem>>, vector<1x8x16xf32>,
    return
  }
  func.func @transform_0(%arg0: i32) -> (i32, i32, i32) {
    %c0_i32 = arith.constant 0 : i32
    %c0_i32_0 = arith.constant 0 : i32
    %c0_i32_1 = arith.constant 0 : i32
    return %arg0, %c0_i32, %c0_i32_0 : i32, i32, i32
  }
  func.func @transform_1(%arg0: i32) -> (i32, i32, i32) {
    %c0_i32 = arith.constant 0 : i32
    %c0_i32_0 = arith.constant 0 : i32
    %c0_i32_1 = arith.constant 0 : i32
    return %arg0, %c0_i32, %c0_i32_0 : i32, i32, i32
  }
  func.func @transform_2(%arg0: i32) -> (i32, i32) {
    %c0_i32 = arith.constant 0 : i32
    %c0_i32_0 = arith.constant 0 : i32
    %c0_i32_1 = arith.constant 0 : i32
    return %c0_i32, %c0_i32_0 : i32, i32
  }
  func.func @transform_3(%arg0: i32) -> (i32, i32) {
    %c0_i32 = arith.constant 0 : i32
    %c0_i32_0 = arith.constant 0 : i32
    %c0_i32_1 = arith.constant 0 : i32
    return %c0_i32, %c0_i32_0 : i32, i32
  }
  func.func @transform_4(%arg0: i32) -> (i32, i32) {
    %c0_i32 = arith.constant 0 : i32
    %c0_i32_0 = arith.constant 0 : i32
    %c0_i32_1 = arith.constant 0 : i32
    return %c0_i32, %c0_i32_0 : i32, i32
  }
  func.func @transform_5(%arg0: i32) -> (i32, i32) {
    %c0_i32 = arith.constant 0 : i32
    %c0_i32_0 = arith.constant 0 : i32
    %c0_i32_1 = arith.constant 0 : i32
    return %c0_i32, %c0_i32_0 : i32, i32
  }
  func.func @transform_6(%arg0: i32) -> (i32, i32, i32) {
    %c0_i32 = arith.constant 0 : i32
    %c0_i32_0 = arith.constant 0 : i32
    %c0_i32_1 = arith.constant 0 : i32
    return %arg0, %c0_i32, %c0_i32_0 : i32, i32, i32
  }
  func.func @transform_7(%arg0: i32) -> (i32, i32, i32) {
    %c0_i32 = arith.constant 0 : i32
    %c0_i32_0 = arith.constant 0 : i32
    %c0_i32_1 = arith.constant 0 : i32
    return %arg0, %c0_i32, %c0_i32_0 : i32, i32, i32
  }
}

</mosaic_0001>

<llo_original>
// kernel: residual_block_forward.1
$region0: #{residual_block_forward.1}
  #allocation0 [shape = 'u32[]', space=smem, size = 0x4, offset = 0x4, fixed_abs, tag = 'smem constant byte address 0x4 - core index']
  #allocation1 [shape = 'u32[144,128]{1,0:T(1,128)}', space=vmem, size = 0x12000, scoped, tag = 'internal scratch']
  #allocation2 [shape = 'f32[8,18]{1,0:T(8,128)}', space=vmem, size = 0x1000, scoped, tag = 'scratch operand']
  #allocation3 [shape = 'f32[24,16]{1,0:T(8,128)}', space=vmem, size = 0x3000, scoped, tag = 'scratch operand']
  #allocation4 [shape = 'f32[16,16]{1,0:T(8,128)}', space=vmem, size = 0x2000, scoped, tag = 'scratch operand']
  %s0 = inlined_call_operand.vmem [shape: f32[2,8,16], index: 0, kind: input, shape index: {}]
  %s1 = inlined_call_operand.vmem [shape: f32[2,8,1], index: 1, kind: input, shape index: {}]
  %s2 = inlined_call_operand.vmem [shape: bf16[16,24], index: 2, kind: input, shape index: {}]
  %s3 = inlined_call_operand.vmem [shape: f32[16,1], index: 3, kind: input, shape index: {}]
  %s4 = inlined_call_operand.vmem [shape: f32[16,8], index: 4, kind: input, shape index: {}]
  %s5 = inlined_call_operand.vmem [shape: f32[16,1], index: 5, kind: input, shape index: {}]
  %s6 = inlined_call_operand.hbm [shape: f32[2,8,16], index: 6, kind: output, shape index: {0}]
  %s7 = inlined_call_operand.hbm [shape: f32[2,8,16], index: 7, kind: output, shape index: {1}]
  %8 = xla_tuple %s6, %s7
  %s9 = sld [smem:[#allocation0]]
  $region65: #{residual_block_forward.1} parent=0
    _
  %s11 = ssub.s32 1, %s9
  %s12 = scalar_select 0, %s11, %s9
  $region1: #{residual_block_forward.1} parent=0
    #allocation5 [shape = 'u8[8192]{0}', space=vmem, size = 0x2000, scoped, tag = 'output window, operand 0']
    #allocation6 [shape = 's32[2]{0}', space=sflag, size = 0x8, scoped, tag = 'scoped memory for residual_block_forward.1']
    #allocation7 [shape = 'u8[8192]{0}', space=vmem, size = 0x2000, scoped, tag = 'output window, operand 1']
    #allocation8 [shape = 's32[2]{0}', space=sflag, size = 0x8, scoped, tag = 'scoped memory for residual_block_forward.1']
    %13 = vsyncpa [#allocation6], 0
    %s14 = scalar_lea.sflag [#allocation6], 1
    %15 = vsyncpa %s14, 0
    %16 = vsyncpa [#allocation8], 0
    %s17 = scalar_lea.sflag [#allocation8], 1
    %18 = vsyncpa %s17, 0
    loop: start=0, step=1, limit=4
    $region2: #{residual_block_forward.1} parent=1 // loop_pre_header
      _
    $region3: #{residual_block_forward.1} parent=1 // loop_header
      %s20 = sphi 0, %s24
      %p21 = scmp.ge.s32.totalorder %s20, 4
      %s30 = sphi 0, %s32
      %s33 = sphi 0, %s30
      %s34 = sphi 0, %s33
      %s50 = sphi 0, %s34
      %s56 = sphi 0, %s58
      %s59 = sphi 0, %s56
      %s60 = sphi 0, %s59
      %s76 = sphi 0, %s60
      %s80 = sphi 0, %s80
      %s82 = sphi 0, %s80
      %s83 = sphi 0, %s82
      %s97 = sphi 0, %s83
      %s101 = sphi 0, %s101
      %s103 = sphi 0, %s101
      %s104 = sphi 0, %s103
      %s118 = sphi 0, %s104
      %s122 = sphi 0, %s122
      %s124 = sphi 0, %s122
      %s125 = sphi 0, %s124
      %s139 = sphi 0, %s125
      %s143 = sphi 0, %s143
      %s145 = sphi 0, %s143
      %s146 = sphi 0, %s145
      %s160 = sphi 0, %s146
      %s166 = sphi 0, %s168
      %s169 = sphi 0, %s166
      %s170 = sphi 0, %s169
      %s186 = sphi 0, %s170
      %s192 = sphi 0, %s194
      %s195 = sphi 0, %s192
      %s196 = sphi 0, %s195
      %s212 = sphi 0, %s196
    $region4: #{residual_block_forward.1} parent=1 // loop_header_branch
      %23 = sbr.rel (%p21) target = $region8
    $region5: #{residual_block_forward.1} parent=1 // loop_body
      %s25 = ssub.s32 %s20, 1
      %s26 = ssub.s32 %s20, 2
      %s27 = sadd.s32 %s20, 1
      %s28 = ssub.s32 %s20, %s27
      %p29 = scmp.eq.s32.totalorder %s28, 0
      %s31 = sadd.s32 %s30, 1
      %s32 = scalar_select %p29, %s30, %s31
      %p35 = pneg %p29
      %p36 = scmp.eq.s32.totalorder %s20, 1
      %p37 = por %p35, %p36
      %p38 = scmp.ne.s32.totalorder %s30, %s33
      %p39 = scmp.eq.s32.totalorder %s20, 0
      %p40 = por %p38, %p39
      %p41 = scmp.ne.s32.totalorder %s30, %s33
      %p42 = scmp.eq.s32.totalorder %s25, 1
      %p43 = por %p41, %p42
      %p44 = scmp.ne.s32.totalorder %s33, %s34
      %p45 = scmp.eq.s32.totalorder %s25, 0
      %p46 = por %p44, %p45
      %p47 = scmp.ne.s32.totalorder %s33, %s34
      %p48 = scmp.eq.s32.totalorder %s26, 1
      %p49 = por %p47, %p48
      %p51 = scmp.ne.s32.totalorder %s34, %s50
      %p52 = scmp.eq.s32.totalorder %s26, 0
      %p53 = por %p51, %p52
      %s54 = ssub.s32 %s20, %s27
      %p55 = scmp.eq.s32.totalorder %s54, 0
      %s57 = sadd.s32 %s56, 1
      %s58 = scalar_select %p55, %s56, %s57
      %p61 = pneg %p55
      %p62 = scmp.eq.s32.totalorder %s20, 1
      %p63 = por %p61, %p62
      %p64 = scmp.ne.s32.totalorder %s56, %s59
      %p65 = scmp.eq.s32.totalorder %s20, 0
      %p66 = por %p64, %p65
      %p67 = scmp.ne.s32.totalorder %s56, %s59
      %p68 = scmp.eq.s32.totalorder %s25, 1
      %p69 = por %p67, %p68
      %p70 = scmp.ne.s32.totalorder %s59, %s60
      %p71 = scmp.eq.s32.totalorder %s25, 0
      %p72 = por %p70, %p71
      %p73 = scmp.ne.s32.totalorder %s59, %s60
      %p74 = scmp.eq.s32.totalorder %s26, 1
      %p75 = por %p73, %p74
      %p77 = scmp.ne.s32.totalorder %s60, %s76
      %p78 = scmp.eq.s32.totalorder %s26, 0
      %p79 = por %p77, %p78
      %s81 = sadd.s32 %s80, 1
      %p84 = scmp.eq.s32.totalorder %s20, 1
      %p85 = scmp.ne.s32.totalorder %s80, %s82
      %p86 = scmp.eq.s32.totalorder %s20, 0
      %p87 = por %p85, %p86
      %p88 = scmp.ne.s32.totalorder %s80, %s82
      %p89 = scmp.eq.s32.totalorder %s25, 1
      %p90 = por %p88, %p89
      %p91 = scmp.ne.s32.totalorder %s82, %s83
      %p92 = scmp.eq.s32.totalorder %s25, 0
      %p93 = por %p91, %p92
      %p94 = scmp.ne.s32.totalorder %s82, %s83
      %p95 = scmp.eq.s32.totalorder %s26, 1
      %p96 = por %p94, %p95
      %p98 = scmp.ne.s32.totalorder %s83, %s97
      %p99 = scmp.eq.s32.totalorder %s26, 0
      %p100 = por %p98, %p99
      %s102 = sadd.s32 %s101, 1
      %p105 = scmp.eq.s32.totalorder %s20, 1
      %p106 = scmp.ne.s32.totalorder %s101, %s103
      %p107 = scmp.eq.s32.totalorder %s20, 0
      %p108 = por %p106, %p107
      %p109 = scmp.ne.s32.totalorder %s101, %s103
      %p110 = scmp.eq.s32.totalorder %s25, 1
      %p111 = por %p109, %p110
      %p112 = scmp.ne.s32.totalorder %s103, %s104
      %p113 = scmp.eq.s32.totalorder %s25, 0
      %p114 = por %p112, %p113
      %p115 = scmp.ne.s32.totalorder %s103, %s104
      %p116 = scmp.eq.s32.totalorder %s26, 1
      %p117 = por %p115, %p116
      %p119 = scmp.ne.s32.totalorder %s104, %s118
      %p120 = scmp.eq.s32.totalorder %s26, 0
      %p121 = por %p119, %p120
      %s123 = sadd.s32 %s122, 1
      %p126 = scmp.eq.s32.totalorder %s20, 1
      %p127 = scmp.ne.s32.totalorder %s122, %s124
      %p128 = scmp.eq.s32.totalorder %s20, 0
      %p129 = por %p127, %p128
      %p130 = scmp.ne.s32.totalorder %s122, %s124
      %p131 = scmp.eq.s32.totalorder %s25, 1
      %p132 = por %p130, %p131
      %p133 = scmp.ne.s32.totalorder %s124, %s125
      %p134 = scmp.eq.s32.totalorder %s25, 0
      %p135 = por %p133, %p134
      %p136 = scmp.ne.s32.totalorder %s124, %s125
      %p137 = scmp.eq.s32.totalorder %s26, 1
      %p138 = por %p136, %p137
      %p140 = scmp.ne.s32.totalorder %s125, %s139
      %p141 = scmp.eq.s32.totalorder %s26, 0
      %p142 = por %p140, %p141
      %s144 = sadd.s32 %s143, 1
      %p147 = scmp.eq.s32.totalorder %s20, 1
      %p148 = scmp.ne.s32.totalorder %s143, %s145
      %p149 = scmp.eq.s32.totalorder %s20, 0
      %p150 = por %p148, %p149
      %p151 = scmp.ne.s32.totalorder %s143, %s145
      %p152 = scmp.eq.s32.totalorder %s25, 1
      %p153 = por %p151, %p152
      %p154 = scmp.ne.s32.totalorder %s145, %s146
      %p155 = scmp.eq.s32.totalorder %s25, 0
      %p156 = por %p154, %p155
      %p157 = scmp.ne.s32.totalorder %s145, %s146
      %p158 = scmp.eq.s32.totalorder %s26, 1
      %p159 = por %p157, %p158
      %p161 = scmp.ne.s32.totalorder %s146, %s160
      %p162 = scmp.eq.s32.totalorder %s26, 0
      %p163 = por %p161, %p162
      %s164 = ssub.s32 %s20, %s27
      %p165 = scmp.eq.s32.totalorder %s164, 0
      %s167 = sadd.s32 %s166, 1
      %s168 = scalar_select %p165, %s166, %s167
      %p171 = pneg %p165
      %p172 = scmp.eq.s32.totalorder %s20, 1
      %p173 = por %p171, %p172
      %p174 = scmp.ne.s32.totalorder %s166, %s169
      %p175 = scmp.eq.s32.totalorder %s20, 0
      %p176 = por %p174, %p175
      %p177 = scmp.ne.s32.totalorder %s166, %s169
      %p178 = scmp.eq.s32.totalorder %s25, 1
      %p179 = por %p177, %p178
      %p180 = scmp.ne.s32.totalorder %s169, %s170
      %p181 = scmp.eq.s32.totalorder %s25, 0
      %p182 = por %p180, %p181
      %p183 = scmp.ne.s32.totalorder %s169, %s170
      %p184 = scmp.eq.s32.totalorder %s26, 1
      %p185 = por %p183, %p184
      %p187 = scmp.ne.s32.totalorder %s170, %s186
      %p188 = scmp.eq.s32.totalorder %s26, 0
      %p189 = por %p187, %p188
      %s190 = ssub.s32 %s20, %s27
      %p191 = scmp.eq.s32.totalorder %s190, 0
      %s193 = sadd.s32 %s192, 1
      %s194 = scalar_select %p191, %s192, %s193
      %p197 = pneg %p191
      %p198 = scmp.eq.s32.totalorder %s20, 1
      %p199 = por %p197, %p198
      %p200 = scmp.ne.s32.totalorder %s192, %s195
      %p201 = scmp.eq.s32.totalorder %s20, 0
      %p202 = por %p200, %p201
      %p203 = scmp.ne.s32.totalorder %s192, %s195
      %p204 = scmp.eq.s32.totalorder %s25, 1
      %p205 = por %p203, %p204
      %p206 = scmp.ne.s32.totalorder %s195, %s196
      %p207 = scmp.eq.s32.totalorder %s25, 0
      %p208 = por %p206, %p207
      %p209 = scmp.ne.s32.totalorder %s195, %s196
      %p210 = scmp.eq.s32.totalorder %s26, 1
      %p211 = por %p209, %p210
      %p213 = scmp.ne.s32.totalorder %s196, %s212
      %p214 = scmp.eq.s32.totalorder %s26, 0
      %p215 = por %p213, %p214
      %p216 = scmp.le.s32.totalorder 1, %s20
      %p217 = scmp.lt.s32.totalorder %s20, 3
      %p218 = pnand %p216, %p217
      %p219 = pneg %p218
      // Predicated region
      $region9: #{residual_block_forward.1} parent=5 // pred_check
        _
      $region10: #{residual_block_forward.1} parent=5 // pred_check_branch
        %221 = sbr.rel (%p218) target = $region12
      $region11: #{residual_block_forward.1} parent=5 // pred_region
        %s222 = ssub.s32 %s20, 1
        // Predicated region
        $region13: #{residual_block_forward.1} parent=11 // pred_check
          %p223 = pneg %p93
        $region14: #{residual_block_forward.1} parent=11 // pred_check_branch
          %225 = sbr.rel (%p223) target = $region16
        $region15: #{residual_block_forward.1} parent=11 // pred_region
          _
        $region16: #{residual_block_forward.1} parent=11 // pred_fallthru
          _
        // Predicated region
        $region17: #{residual_block_forward.1} parent=11 // pred_check
          %p226 = pneg %p114
        $region18: #{residual_block_forward.1} parent=11 // pred_check_branch
          %228 = sbr.rel (%p226) target = $region20
        $region19: #{residual_block_forward.1} parent=11 // pred_region
          _
        $region20: #{residual_block_forward.1} parent=11 // pred_fallthru
          _
        // Predicated region
        $region21: #{residual_block_forward.1} parent=11 // pred_check
          %p229 = pneg %p135
        $region22: #{residual_block_forward.1} parent=11 // pred_check_branch
          %231 = sbr.rel (%p229) target = $region24
        $region23: #{residual_block_forward.1} parent=11 // pred_region
          _
        $region24: #{residual_block_forward.1} parent=11 // pred_fallthru
          _
        // Predicated region
        $region25: #{residual_block_forward.1} parent=11 // pred_check
          %p232 = pneg %p156
        $region26: #{residual_block_forward.1} parent=11 // pred_check_branch
          %234 = sbr.rel (%p232) target = $region28
        $region27: #{residual_block_forward.1} parent=11 // pred_region
          _
        $region28: #{residual_block_forward.1} parent=11 // pred_fallthru
          _
      $region12: #{residual_block_forward.1} parent=5 // pred_fallthru
        _
      %p235 = scmp.lt.s32.totalorder %s20, 2
      // Predicated region
      $region29: #{residual_block_forward.1} parent=5 // pred_check
        %p236 = pneg %p235
      $region30: #{residual_block_forward.1} parent=5 // pred_check_branch
        %238 = sbr.rel (%p236) target = $region32
      $region31: #{residual_block_forward.1} parent=5 // pred_region
        // Predicated region
        $region33: #{residual_block_forward.1} parent=31 // pred_check
          %p239 = pneg %p40
        $region34: #{residual_block_forward.1} parent=31 // pred_check_branch
          %241 = sbr.rel (%p239) target = $region36
        $region35: #{residual_block_forward.1} parent=31 // pred_region
          %p242 = scmp.lt.s32.totalorder %s20, 1
          %s243 = scalar_select %p242, %s20, 1
          %s244 = smul.addr %s243, 8
          %s245 = scalar_lea.vmem %s0, %s244
        $region36: #{residual_block_forward.1} parent=31 // pred_fallthru
          _
        // Predicated region
        $region37: #{residual_block_forward.1} parent=31 // pred_check
          %p246 = pneg %p66
        $region38: #{residual_block_forward.1} parent=31 // pred_check_branch
          %248 = sbr.rel (%p246) target = $region40
        $region39: #{residual_block_forward.1} parent=31 // pred_region
          %p249 = scmp.lt.s32.totalorder %s20, 1
          %s250 = scalar_select %p249, %s20, 1
          %s251 = smul.addr %s250, 8
          %s252 = scalar_lea.vmem %s1, %s251
        $region40: #{residual_block_forward.1} parent=31 // pred_fallthru
          _
      $region32: #{residual_block_forward.1} parent=5 // pred_fallthru
        _
      %p253 = scmp.le.s32.totalorder 1, %s20
      %p254 = scmp.lt.s32.totalorder %s20, 3
      %p255 = pnand %p253, %p254
      %p256 = pneg %p255
      // Predicated region
      $region41: #{residual_block_forward.1} parent=5 // pred_check
        _
      $region42: #{residual_block_forward.1} parent=5 // pred_check_branch
        %258 = sbr.rel (%p255) target = $region44
      $region43: #{residual_block_forward.1} parent=5 // pred_region
        %s259 = ssub.s32 %s20, 1
        %p260 = scmp.lt.s32.totalorder %s25, 1
        %s261 = scalar_select %p260, %s25, 1
        %s262 = smul.addr %s261, 8
        %s263 = scalar_lea.vmem %s0, %s262
        %p264 = pneg %p46
        %p265 = pneg %p43
        %p266 = scmp.lt.s32.totalorder %s25, 1
        %s267 = scalar_select %p266, %s25, 1
        %s268 = smul.addr %s267, 8
        %s269 = scalar_lea.vmem %s1, %s268
        %p270 = pneg %p72
        %p271 = pneg %p69
        %p272 = pneg %p93
        %p273 = pneg %p90
        %p274 = pneg %p114
        %p275 = pneg %p111
        %p276 = pneg %p135
        %p277 = pneg %p132
        %p278 = pneg %p156
        %p279 = pneg %p153
        %p280 = pneg %p182
        %p281 = pneg %p179
        %s282 = sand.u32 %s169, 1
        %s283 = scalar_lea.sflag [#allocation6], %s282
        %s284 = sand.u32 %s169, 1
        %s285 = smul.addr %s284, 8
        %s286 = scalar_lea.vmem [#allocation5], %s285
        %p287 = pneg %p208
        %p288 = pneg %p205
        %s289 = sand.u32 %s195, 1
        %s290 = scalar_lea.sflag [#allocation8], %s289
        %s291 = sand.u32 %s195, 1
        %s292 = smul.addr %s291, 8
        %s293 = scalar_lea.vmem [#allocation7], %s292
        %p294 = scmp.lt.s32.totalorder %s25, 1
        %s295 = scalar_select %p294, %s25, 1
        %s296 = smul.addr %s295, 8
        %s297 = scalar_lea.vmem %s0, %s296
        %p298 = scmp.lt.s32.totalorder %s25, 1
        %s299 = scalar_select %p298, %s25, 1
        %s300 = smul.addr %s299, 8
        %s301 = scalar_lea.vmem %s1, %s300
        %vm303 = vcmask 7168
        %304 = vst.msk [vmem:[#allocation2] sm:$0xff] %vm303, 0.0
        %vm305 = vcmask 146568
        %306 = vst.msk [vmem:[#allocation2] sm:$0xff] %vm305, 0.0
        %v307 = vld [vmem:[%s297] sm:$0xff]
        %v308 = vld [vmem:[%s301] sm:$0xff]
        %310 = vset.pattern.permute.xlu0 0
        %311 = vperm.xlu0 %310, %v308
        %v312 = vpop.permute.xlu0 %311
        %v314 = vadd.f32 %v307, %v312
        %316 = vrot.lane.b32.xlu0 %v314, 1
        %v317 = vpop.permute.xlu0 %316
        %vm319 = vcmask 138248
        %320 = vst.msk [vmem:[#allocation2] sm:$0xff] %vm319, %v317
        %v321 = vld [vmem:[#allocation2] sm:$0xff]
        %vm322 = vcmask 130048
        %323 = vst.msk [vmem:[#allocation3] sm:$0xff] %vm322, %v321
        %v324 = vld [vmem:[#allocation2] sm:$0xff]
        %326 = vrot.lane.b32.xlu0 %v324, 127
        %v327 = vpop.permute.xlu0 %326
        %329 = vst.msk [vmem:[#allocation3 + $0x8] sm:$0xff] %vm322, %v327
        %v330 = vld [vmem:[#allocation2] sm:$0xff]
        %332 = vrot.lane.b32.xlu0 %v330, 126
        %v333 = vpop.permute.xlu0 %332
        %335 = vst.msk [vmem:[#allocation3 + $0x10] sm:$0xff] %vm322, %v333
        %v336 = vld [vmem:[%s2] sm:$0xf]
        %v337 = vld [vmem:[%s2 + $0x4] sm:$0xf]
        %v338 = vld [vmem:[#allocation3] sm:$0xff]
        %v339 = vld [vmem:[#allocation3 + $0x8] sm:$0xff]
        %v340 = vld [vmem:[#allocation3 + $0x10] sm:$0xff]
        %v341 = vpack.c.bf16 %v339, %v338
        %v342 = vpack.c.bf16 %v340, %v340
        %v343 = vld [vmem:[%s3] sm:$0xff]
        %v344 = vld [vmem:[%s3 + $0x8] sm:$0xff]
        %346 = vset.pattern.permute.xlu0 0
        %347 = vperm.xlu0 %346, %v343
        %v348 = vpop.permute.xlu0 %347
        %351 = vset.pattern.permute.xlu0 0
        %352 = vperm.xlu0 %351, %v344
        %v353 = vpop.permute.xlu0 %352
        %v357 = vunpack.c.l.b16 %v336
        %v358 = vunpack.c.l.b16 %v337
        %v359 = vpack.c.b16 %v358, %v357
        %vm360 = vcmask 195584
        %v362 = vsel %vm360, %v359, 0
        %vm364 = vcmask 1043456
        %v366 = vsel %vm364, %v342, 0
        %368 = vmatprep.subr.bf16.mxu0 0
        %369 = vmatpush1.bf16.msra.mxu0 0
        %370 = vmatprep.subr.bf16.mxu0 0
        %371 = vmatpush1.bf16.msra.mxu0 0
        %372 = vmatprep.subr.bf16.mxu0 0
        %373 = vmatpush1.bf16.msra.mxu0 0
        %374 = vmatprep.subr.bf16.mxu0 0
        %375 = vmatpush1.bf16.msra.mxu0 0
        %376 = vmatprep.subr.bf16.mxu0 0
        %377 = vmatpush1.bf16.msra.mxu0 0
        %378 = vmatprep.subr.bf16.mxu0 0
        %379 = vmatpush1.bf16.msra.mxu0 0
        %380 = vmatprep.subr.bf16.mxu0 0
        %381 = vmatpush1.bf16.msra.mxu0 %v366
        %382 = vmatprep.subr.bf16.mxu0 0
        %383 = vmatpush1.bf16.msra.mxu0 %v341
        %384 = vmatprep.subr.bf16.mxu0 0
        %385 = vmatpush2.bf16.msra.mxu0 0
        %386 = vmatprep.subr.bf16.mxu0 0
        %387 = vmatpush2.bf16.msra.mxu0 0
        %388 = vmatprep.subr.bf16.mxu0 0
        %389 = vmatpush2.bf16.msra.mxu0 0
        %390 = vmatprep.subr.bf16.mxu0 0
        %391 = vmatpush2.bf16.msra.mxu0 0
        %392 = vmatprep.subr.bf16.mxu0 0
        %393 = vmatpush2.bf16.msra.mxu0 0
        %394 = vmatprep.subr.bf16.mxu0 0
        %395 = vmatpush2.bf16.msra.mxu0 0
        %396 = vmatprep.subr.bf16.mxu0 0
        %397 = vmatpush2.bf16.msra.mxu0 0
        %398 = vmatprep.subr.bf16.mxu0 0
        %399 = vmatpush2.bf16.msra.mxu0 0
        %400 = vmatprep.mubr.bf16.mxu0 0
        %401 = vmatmul.mubr.bf16.gmra.mxu0 %v362
        %v402 = vpop.f32.mrf.mxu0
        %v403 = vadd.f32 %v348, %v402
        %v404 = vpop.f32.mrf.mxu0
        %v405 = vpop.f32.mrf.mxu0
        %v406 = vadd.f32 %v353, %v405
        %v407 = vpop.f32.mrf.mxu0
        %408 = vdwg.mxu0
        %v409 = vtanh.pop %v403
        %v410 = vxor.u32 %v406, 2147483648
        %v411 = vmul.f32 %v410, 1.442695
        %v412 = vpow.pop %v411
        %v413 = vadd.f32 %v412, 1.0
        %v414 = vrcp.pop %v413
        %v415 = vmul.f32 1.0, %v414
        %v416 = vmul.f32 %v409, %v415
        %v417 = vld [vmem:[%s4] sm:$0xff]
        %v418 = vld [vmem:[%s4 + $0x8] sm:$0xff]
        %v419 = vld [vmem:[%s5] sm:$0xff]
        %v420 = vld [vmem:[%s5 + $0x8] sm:$0xff]
        %422 = vset.pattern.permute.xlu0 0
        %423 = vperm.xlu0 %422, %v419
        %v424 = vpop.permute.xlu0 %423
        %427 = vset.pattern.permute.xlu0 0
        %428 = vperm.xlu0 %427, %v420
        %v429 = vpop.permute.xlu0 %428
        %vm431 = vcmask 64512
        %v433 = vsel %vm431, %v417, 0
        %v436 = vsel %vm431, %v418, 0
        %438 = vmatprep.subr.mxu0 0.0
        %439 = vmatpush1.msra.mxu0 0.0
        %440 = vmatprep.subr.mxu0 0.0
        %441 = vmatpush1.msra.mxu0 0.0
        %442 = vmatprep.subr.mxu0 0.0
        %443 = vmatpush1.msra.mxu0 0.0
        %444 = vmatprep.subr.mxu0 0.0
        %445 = vmatpush1.msra.mxu0 0.0
        %446 = vmatprep.subr.mxu0 0.0
        %447 = vmatpush1.msra.mxu0 0.0
        %448 = vmatprep.subr.mxu0 0.0
        %449 = vmatpush1.msra.mxu0 0.0
        %450 = vmatprep.subr.mxu0 0.0
        %451 = vmatpush1.msra.mxu0 0.0
        %452 = vmatprep.subr.mxu0 0.0
        %453 = vmatpush1.msra.mxu0 0.0
        %454 = vmatprep.subr.mxu0 0.0
        %455 = vmatpush1.msra.mxu0 0.0
        %456 = vmatprep.subr.mxu0 0.0
        %457 = vmatpush1.msra.mxu0 0.0
        %458 = vmatprep.subr.mxu0 0.0
        %459 = vmatpush1.msra.mxu0 0.0
        %460 = vmatprep.subr.mxu0 0.0
        %461 = vmatpush1.msra.mxu0 0.0
        %462 = vmatprep.subr.mxu0 0.0
        %463 = vmatpush1.msra.mxu0 0.0
        %464 = vmatprep.subr.mxu0 0.0
        %465 = vmatpush1.msra.mxu0 0.0
        %466 = vmatprep.subr.mxu0 0.0
        %467 = vmatpush1.msra.mxu0 0.0
        %468 = vmatprep.subr.mxu0 0.0
        %469 = vmatpush1.msra.mxu0 %v416
        %470 = vmatprep.subr.mxu0 0.0
        %471 = vmatpush2.msra.mxu0 0.0
        %472 = vmatprep.subr.mxu0 0.0
        %473 = vmatpush2.msra.mxu0 0.0
        %474 = vmatprep.subr.mxu0 0.0
        %475 = vmatpush2.msra.mxu0 0.0
        %476 = vmatprep.subr.mxu0 0.0
        %477 = vmatpush2.msra.mxu0 0.0
        %478 = vmatprep.subr.mxu0 0.0
        %479 = vmatpush2.msra.mxu0 0.0
        %480 = vmatprep.subr.mxu0 0.0
        %481 = vmatpush2.msra.mxu0 0.0
        %482 = vmatprep.subr.mxu0 0.0
        %483 = vmatpush2.msra.mxu0 0.0
        %484 = vmatprep.subr.mxu0 0.0
        %485 = vmatpush2.msra.mxu0 0.0
        %486 = vmatprep.subr.mxu0 0.0
        %487 = vmatpush2.msra.mxu0 0.0
        %488 = vmatprep.subr.mxu0 0.0
        %489 = vmatpush2.msra.mxu0 0.0
        %490 = vmatprep.subr.mxu0 0.0
        %491 = vmatpush2.msra.mxu0 0.0
        %492 = vmatprep.subr.mxu0 0.0
        %493 = vmatpush2.msra.mxu0 0.0
        %494 = vmatprep.subr.mxu0 0.0
        %495 = vmatpush2.msra.mxu0 0.0
        %496 = vmatprep.subr.mxu0 0.0
        %497 = vmatpush2.msra.mxu0 0.0
        %498 = vmatprep.subr.mxu0 0.0
        %499 = vmatpush2.msra.mxu0 0.0
        %500 = vmatprep.subr.mxu0 0.0
        %501 = vmatpush2.msra.mxu0 0.0
        %502 = vmatprep.mubr.f32.mxu0 0.0
        %503 = vmatmul.mubr.f32.gmra.mxu0 %v433
        %v504 = vpop.f32.mrf.mxu0
        %v505 = vadd.f32 %v424, %v504
        %v506 = vpop.f32.mrf.mxu0
        %507 = vmatprep.mubr.f32.mxu0 0.0
        %508 = vmatmul.mubr.f32.gmra.mxu0 %v436
        %v509 = vpop.f32.mrf.mxu0
        %v510 = vadd.f32 %v429, %v509
        %v511 = vpop.f32.mrf.mxu0
        %512 = vdwg.mxu0
        %513 = vst.msk [vmem:[#allocation4] sm:$0xff] %vm322, %v505
        %514 = vst.msk [vmem:[#allocation4 + $0x8] sm:$0xff] %vm322, %v510
        %v515 = vld [vmem:[#allocation4] sm:$0xff]
        %v516 = vld [vmem:[%s297] sm:$0xff]
        %v517 = vadd.f32 %v516, %v515
        %v518 = vmul.f32 %v517, 0.70710677
        %519 = vst.msk [vmem:[%s286] sm:$0xff] %vm322, %v518
        %v520 = vld [vmem:[#allocation4 + $0x8] sm:$0xff]
        %521 = vst.msk [vmem:[%s293] sm:$0xff] %vm322, %v520
        %s522 = sand.u32 %s169, 1
        %s523 = scalar_lea.sflag [#allocation6], %s522
        %s524 = sand.u32 %s169, 1
        %s525 = smul.addr %s524, 8
        %s526 = scalar_lea.vmem [#allocation5], %s525
        %s527 = sand.u32 %s195, 1
        %s528 = scalar_lea.sflag [#allocation8], %s527
        %s529 = sand.u32 %s195, 1
        %s530 = smul.addr %s529, 8
        %s531 = scalar_lea.vmem [#allocation7], %s530
        // Predicated region
        $region45: #{residual_block_forward.1} parent=43 // pred_check
          %p532 = pneg %p179
        $region46: #{residual_block_forward.1} parent=43 // pred_check_branch
          %534 = sbr.rel (%p532) target = $region48
        $region47: #{residual_block_forward.1} parent=43 // pred_region
          %s536 = ssub.s32 128, 128
          %537 = vsyncadd %s523, %s536
          %s538 = smul.addr %s25, 128
          %s539 = scalar_lea.hbm %s6, %s538
          %s541 = sshll.u32 %s526, 4
          %s542 = int_to_ptr.vmem [resolvable:$true] %s541
          %544 = dma.vmem_to_hbm [thread:$0]  %s542, 128, %s539, %s523
        $region48: #{residual_block_forward.1} parent=43 // pred_fallthru
          _
        // Predicated region
        $region49: #{residual_block_forward.1} parent=43 // pred_check
          %p545 = pneg %p205
        $region50: #{residual_block_forward.1} parent=43 // pred_check_branch
          %547 = sbr.rel (%p545) target = $region52
        $region51: #{residual_block_forward.1} parent=43 // pred_region
          %s549 = ssub.s32 128, 128
          %550 = vsyncadd %s528, %s549
          %s551 = smul.addr %s25, 128
          %s552 = scalar_lea.hbm %s7, %s551
          %s554 = sshll.u32 %s531, 4
          %s555 = int_to_ptr.vmem [resolvable:$true] %s554
          %557 = dma.vmem_to_hbm [thread:$0]  %s555, 128, %s552, %s528
        $region52: #{residual_block_forward.1} parent=43 // pred_fallthru
          _
      $region44: #{residual_block_forward.1} parent=5 // pred_fallthru
        _
      %p558 = scmp.le.s32.totalorder 2, %s20
      // Predicated region
      $region53: #{residual_block_forward.1} parent=5 // pred_check
        %p559 = pneg %p558
      $region54: #{residual_block_forward.1} parent=5 // pred_check_branch
        %561 = sbr.rel (%p559) target = $region56
      $region55: #{residual_block_forward.1} parent=5 // pred_region
        %s562 = ssub.s32 %s20, 2
        // Predicated region
        $region57: #{residual_block_forward.1} parent=55 // pred_check
          %p563 = pneg %p185
        $region58: #{residual_block_forward.1} parent=55 // pred_check_branch
          %565 = sbr.rel (%p563) target = $region60
        $region59: #{residual_block_forward.1} parent=55 // pred_region
          %s566 = sand.u32 %s170, 1
          %s567 = scalar_lea.sflag [#allocation6], %s566
          %s568 = sand.u32 %s170, 1
          %s569 = smul.addr %s568, 8
          %s570 = scalar_lea.vmem [#allocation5], %s569
          %571 = dma.done %s567, 128
        $region60: #{residual_block_forward.1} parent=55 // pred_fallthru
          _
        // Predicated region
        $region61: #{residual_block_forward.1} parent=55 // pred_check
          %p572 = pneg %p211
        $region62: #{residual_block_forward.1} parent=55 // pred_check_branch
          %574 = sbr.rel (%p572) target = $region64
        $region63: #{residual_block_forward.1} parent=55 // pred_region
          %s575 = sand.u32 %s196, 1
          %s576 = scalar_lea.sflag [#allocation8], %s575
          %s577 = sand.u32 %s196, 1
          %s578 = smul.addr %s577, 8
          %s579 = scalar_lea.vmem [#allocation7], %s578
          %580 = dma.done %s576, 128
        $region64: #{residual_block_forward.1} parent=55 // pred_fallthru
          _
      $region56: #{residual_block_forward.1} parent=5 // pred_fallthru
        _
    $region6: #{residual_block_forward.1} parent=1 // loop_footer
      %s24 = sadd.s32 1, %s20
    $region7: #{residual_block_forward.1} parent=1 // loop_footer_branch
      %19 = sbr.rel target = $region3
    $region8: #{residual_block_forward.1} parent=1 // loop_exit
      _
    %581 = vsyncpa [#allocation6], 1
    %s582 = scalar_lea.sflag [#allocation6], 1
    %583 = vsyncpa %s582, 1
    %584 = vsyncpa [#allocation8], 1
    %s585 = scalar_lea.sflag [#allocation8], 1
    %586 = vsyncpa %s585, 1

</llo_original>
